<compile_context>
chip_gen: v7x
topology: tpu7x:2x2x1
jax: 0.10.0
libtpu: 0.0.40
codegen_flags: <defaults>
</compile_context>

<pallas_src>
import functools

import jax
import jax.numpy as jnp
from jax.experimental import pallas as pl
from jax.experimental.pallas import tpu as pltpu

NEG_SLOPE = 0.01  # torch.nn.LeakyReLU default negative_slope


def _ceil8(n):
    return -(-n // 8) * 8


def mlp_kernel(x_ref, w1_ref, w2_ref, w3_ref, w4_ref, b_ref, o_ref, *, use_bf16=False):
    """Whole TinyModel forward for one (features, batch)-transposed batch tile."""
    hidden, f_in = w1_ref.shape
    f_out = w4_ref.shape[0]
    seg = _ceil8(hidden)  # 8-aligned packed-bias segment stride -> free ref views

    b1 = b_ref[0 * seg:0 * seg + hidden, :]
    b2 = b_ref[1 * seg:1 * seg + hidden, :]
    b3 = b_ref[2 * seg:2 * seg + hidden, :]
    b4 = b_ref[3 * seg:3 * seg + f_out, :]

    def leaky_relu(v):
        return jnp.where(v >= 0, v, NEG_SLOPE * v)

    def mm(w, h):
        if use_bf16:  # optional: MXU is bf16-native; needs looser tolerance
            w = w.astype(jnp.bfloat16)
            h = h.astype(jnp.bfloat16)
        return jnp.dot(w, h, preferred_element_type=jnp.float32)

    x_t = x_ref[...]                                   # (f_in, tb)

    # Layer 1: K == f_in == 2 is tiny -> two VPU broadcast-FMAs, keeps the MXU
    # (vector-extended slot) free instead of paying full MXU pass cadence at
    # <2% array utilization.
    h = b1 + w1_ref[:, 0:1] * x_t[0:1, :]              # (hidden, tb)
    for k in range(1, f_in):                           # static, f_in - 1 == 1 iter
        h = h + w1_ref[:, k:k + 1] * x_t[k:k + 1, :]
    h = leaky_relu(h)

    # Layers 2/3: real 32x32 matmuls -> MXU, f32 accumulation.
    h = leaky_relu(mm(w2_ref[...], h) + b2)
    h = leaky_relu(mm(w3_ref[...], h) + b3)

    # Layer 4 (M = f_out = 2): kept on the otherwise-idle MXU; result (f_out, tb)
    # then sigmoid on the EUP.  Output tile is lane-dense -> unmasked vst.
    h = jnp.dot(w4_ref[...], h, preferred_element_type=jnp.float32) + b4
    o_ref[...] = jax.nn.sigmoid(h)


# --------------------------------------------------------------------------
# Generation-aware batch tiling (review items for v5e / v6e / v7x).
# --------------------------------------------------------------------------
_GEN_CFG = {
    # max_tb keeps 2x x-tile + 2x out-tile + ~3 live (32, tb) f32 temps well
    # inside the scoped-VMEM default for each generation.
    "v5e":   dict(min_steps=1, max_tb=16 * 1024),  # 16 MiB scoped-VMEM default
    "v6e":   dict(min_steps=1, max_tb=32 * 1024),  # 32 MiB scoped default, 1 TC
    "v7x":   dict(min_steps=2, max_tb=16 * 1024),  # 2 TCs/chip, 64 MiB phys / 32 MiB scoped
    "other": dict(min_steps=2, max_tb=16 * 1024),  # conservative (covers v4/v5p megacore)
}


def _tpu_generation():
    try:
        kind = jax.devices()[0].device_kind.lower()
    except Exception:
        return "other"
    if "v5 lite" in kind or "v5lite" in kind or "v5e" in kind:
        return "v5e"
    if "v6" in kind:
        return "v6e"
    if "7" in kind:
        return "v7x"
    return "other"


def _choose_tiling(batch, gen):
    """Largest lane-dense batch tile within the per-generation VMEM budget.

    v7x (and unknown megacore chips) prefer an even >=2-step grid so
    dimension_semantics=("parallel",) splits the batch evenly across the two
    TensorCores; v6e/v5e just take the biggest tile (per-step overhead ~0.35us
    dominates small tiles).
    """
    cfg = _GEN_CFG[gen]
    steps = max(cfg["min_steps"], pl.cdiv(batch, cfg["max_tb"]))
    if cfg["min_steps"] > 1 and steps % cfg["min_steps"]:
        steps += cfg["min_steps"] - steps % cfg["min_steps"]
    tb = pl.cdiv(batch, steps)
    tb = pl.cdiv(tb, 128) * 128      # lane-dense (multiple of 128)
    return tb, steps


# --------------------------------------------------------------------------
# Wrappers.
# --------------------------------------------------------------------------
def tiny_model_forward_t(x_t, params, *, tb=None, use_bf16=False):
    """Preferred entry point: x_t is (f_in, batch); returns (f_out, batch).

    Keeping the surrounding model in this (features, batch) layout means NO
    wrapper-side HBM transposes at all (the review's transpose-elimination
    item): the kernel is the only HBM reader/writer of the activations.
    """
    f_in, batch = x_t.shape
    hidden = params["w1"].shape[0]
    f_out = params["w4"].shape[0]

    gen = _tpu_generation()
    if tb is None:
        tb, steps = _choose_tiling(batch, gen)
    else:
        assert tb % 128 == 0, "tb must be lane-dense (multiple of 128)"
        steps = pl.cdiv(batch, tb)

    padded = steps * tb
    if padded != batch:  # pad -> unmasked stores + even TC split; slice at the end
        x_t = jnp.pad(x_t, ((0, 0), (0, padded - batch)))

    # Pack biases [b1|b2|b3|b4] with 8-aligned segment offsets -> one tiny DMA
    # for all resident params, free in-kernel sublane views.
    seg = _ceil8(hidden)

    def pad_rows(b, rows):
        return jnp.pad(b, ((0, rows - b.shape[0]), (0, 0)))

    b_packed = jnp.concatenate(
        [pad_rows(params["b1"], seg), pad_rows(params["b2"], seg),
         pad_rows(params["b3"], seg), pad_rows(params["b4"], _ceil8(f_out))],
        axis=0)

    def resident(shape):
        # Same block index every grid step -> buffer stays resident in VMEM and
        # re-DMA is elided after the first step.
        return pl.BlockSpec(shape, lambda i: (0,) * len(shape))

    kernel = functools.partial(mlp_kernel, use_bf16=use_bf16)
    out_t = pl.pallas_call(
        kernel,
        out_shape=jax.ShapeDtypeStruct((f_out, padded), jnp.float32),
        grid=(steps,),
        in_specs=[
            pl.BlockSpec((f_in, tb), lambda i: (0, i)),   # x^T tiled on batch (lanes)
            resident((hidden, f_in)),                     # W1 (torch layout: out, in)
            resident((hidden, hidden)),                   # W2
            resident((hidden, hidden)),                   # W3
            resident((f_out, hidden)),                    # W4
            resident((b_packed.shape[0], 1)),             # packed biases
        ],
        out_specs=pl.BlockSpec((f_out, tb), lambda i: (0, i)),
        compiler_params=pltpu.CompilerParams(
            dimension_semantics=("parallel",)),           # batch steps -> v7x's 2 TCs
    )(x_t, params["w1"], params["w2"], params["w3"], params["w4"], b_packed)

    return out_t if padded == batch else out_t[:, :batch]


def tiny_model_forward(x, params, *, tb=None, use_bf16=False):
    """torch-compatible (batch, features) interface.

    The two transposes here are the only extra HBM traffic; callers that can
    keep activations in (features, batch) layout should use
    tiny_model_forward_t directly and pay none.
    """
    return tiny_model_forward_t(x.T, params, tb=tb, use_bf16=use_bf16).T


# --------------------------------------------------------------------------
# Params / reference.
# --------------------------------------------------------------------------
def init_params(key, hidden=32, w=2):
    """Deterministic init mirroring torch.nn.Linear's U(-1/sqrt(fan_in), +)."""
    def linear(k, fan_in, fan_out):
        kw, kb = jax.random.split(k)
        bound = 1.0 / (fan_in ** 0.5)
        # Torch layout (out_features, in_features); bias stored as a column so it
        # broadcasts against the (out_features, batch) transposed activations.
        W = jax.random.uniform(kw, (fan_out, fan_in), jnp.float32, -bound, bound)
        b = jax.random.uniform(kb, (fan_out, 1), jnp.float32, -bound, bound)
        return W, b

    k1, k2, k3, k4 = jax.random.split(key, 4)
    w1, b1 = linear(k1, w, hidden)
    w2, b2 = linear(k2, hidden, hidden)
    w3, b3 = linear(k3, hidden, hidden)
    w4, b4 = linear(k4, hidden, w)
    return dict(w1=w1, b1=b1, w2=w2, b2=b2, w3=w3, b3=b3, w4=w4, b4=b4)


def reference_forward(x, p):
    def leaky_relu(v):
        return jnp.where(v >= 0, v, NEG_SLOPE * v)
    h = leaky_relu(x @ p["w1"].T + p["b1"][:, 0])
    h = leaky_relu(h @ p["w2"].T + p["b2"][:, 0])
    h = leaky_relu(h @ p["w3"].T + p["b3"][:, 0])
    return jax.nn.sigmoid(h @ p["w4"].T + p["b4"][:, 0])


if __name__ == "__main__":
    key = jax.random.PRNGKey(0)
    k_param, k_x = jax.random.split(key)

    # Small shapes consistent with TinyModel(x=hidden, w=w_feat).
    batch, w_feat, hidden = 256, 2, 32
    params = init_params(k_param, hidden=hidden, w=w_feat)
    x = jax.random.normal(k_x, (batch, w_feat), jnp.float32)
    ref = reference_forward(x, params)

    # torch-compatible (batch, features) path.
    out = jax.block_until_ready(tiny_model_forward(x, params))
    assert out.shape == (batch, w_feat)
    assert jnp.allclose(out, ref, atol=1e-5, rtol=1e-5)

    # Preferred (features, batch) path: zero wrapper-side HBM transposes.
    out_t = jax.block_until_ready(tiny_model_forward_t(x.T, params))
    assert out_t.shape == (w_feat, batch)
    assert jnp.allclose(out_t, ref.T, atol=1e-5, rtol=1e-5)

    # Ragged batch exercises the pad-to-lane-dense / slice path.
    out_r = jax.block_until_ready(tiny_model_forward(x[:200], params))
    assert out_r.shape == (200, w_feat)
    assert jnp.allclose(out_r, ref[:200], atol=1e-5, rtol=1e-5)

    print("KERNEL_OK")
</pallas_src>

<mosaic_0001>
module attributes {stable_mosaic.version = 11 : i64} {
  func.func @mlp_kernel(%arg0: i32, %arg1: memref<2x128xf32, #tpu.memory_space<vmem>>, %arg2: memref<32x2xf32, #tpu.memory_space<vmem>>, %arg3: memref<32x32xf32, #tpu.memory_space<vmem>>, %arg4: memref<32x32xf32, #tpu.memory_space<vmem>>, %arg5: memref<2x32xf32, #tpu.memory_space<vmem>>, %arg6: memref<104x1xf32, #tpu.memory_space<vmem>>, %arg7: memref<2x128xf32, #tpu.memory_space<vmem>>) attributes {dimension_semantics = [#tpu.dimension_semantics<parallel>], iteration_bounds = array<i64: 2>, scalar_prefetch = 0 : i64, scratch_operands = 0 : i64, tpu.core_type = #tpu.core_type<tc>, window_params = [{transform_indices = @transform_0, window_bounds = array<i64: 2, 128>}, {pipeline_mode = #tpu.pipeline_mode<synchronous>, transform_indices = @transform_1, window_bounds = array<i64: 32, 2>}, {pipeline_mode = #tpu.pipeline_mode<synchronous>, transform_indices = @transform_2, window_bounds = array<i64: 32, 32>}, {pipeline_mode = #tpu.pipeline_mode<synchronous>, transform_indices = @transform_3, window_bounds = array<i64: 32, 32>}, {pipeline_mode = #tpu.pipeline_mode<synchronous>, transform_indices = @transform_4, window_bounds = array<i64: 2, 32>}, {pipeline_mode = #tpu.pipeline_mode<synchronous>, transform_indices = @transform_5, window_bounds = array<i64: 104, 1>}, {transform_indices = @transform_6, window_bounds = array<i64: 2, 128>}]} {
    %c0 = arith.constant 0 : index
    %c0_0 = arith.constant 0 : index
    %0 = vector.load %arg6[%c0, %c0_0] : memref<104x1xf32, #tpu.memory_space<vmem>>, vector<32x1xf32>
    %c32 = arith.constant 32 : index
    %c0_1 = arith.constant 0 : index
    %1 = vector.load %arg6[%c32, %c0_1] : memref<104x1xf32, #tpu.memory_space<vmem>>, vector<32x1xf32>
    %c64 = arith.constant 64 : index
    %c0_2 = arith.constant 0 : index
    %2 = vector.load %arg6[%c64, %c0_2] : memref<104x1xf32, #tpu.memory_space<vmem>>, vector<32x1xf32>
    %c96 = arith.constant 96 : index
    %c0_3 = arith.constant 0 : index
    %3 = vector.load %arg6[%c96, %c0_3] : memref<104x1xf32, #tpu.memory_space<vmem>>, vector<2x1xf32>
    %c0_4 = arith.constant 0 : index
    %c0_5 = arith.constant 0 : index
    %4 = vector.load %arg1[%c0_4, %c0_5] : memref<2x128xf32, #tpu.memory_space<vmem>>, vector<2x128xf32>
    %c0_6 = arith.constant 0 : index
    %c0_7 = arith.constant 0 : index
    %5 = vector.load %arg2[%c0_6, %c0_7] : memref<32x2xf32, #tpu.memory_space<vmem>>, vector<32x1xf32>
    %6 = vector.extract_strided_slice %4 {offsets = [0, 0], sizes = [1, 128], strides = [1, 1]} : vector<2x128xf32> to vector<1x128xf32>
    %7 = vector.broadcast %5 : vector<32x1xf32> to vector<32x128xf32>
    %8 = vector.broadcast %6 : vector<1x128xf32> to vector<32x128xf32>
    %9 = arith.mulf %7, %8 : vector<32x128xf32>
    %10 = vector.broadcast %0 : vector<32x1xf32> to vector<32x128xf32>
    %11 = arith.addf %10, %9 : vector<32x128xf32>
    %c0_8 = arith.constant 0 : index
    %c1 = arith.constant 1 : index
    %12 = vector.load %arg2[%c0_8, %c1] : memref<32x2xf32, #tpu.memory_space<vmem>>, vector<32x1xf32>
    %13 = vector.extract_strided_slice %4 {offsets = [1, 0], sizes = [1, 128], strides = [1, 1]} : vector<2x128xf32> to vector<1x128xf32>
    %14 = vector.broadcast %12 : vector<32x1xf32> to vector<32x128xf32>
    %15 = vector.broadcast %13 : vector<1x128xf32> to vector<32x128xf32>
    %16 = arith.mulf %14, %15 : vector<32x128xf32>
    %17 = arith.addf %11, %16 : vector<32x128xf32>
    %cst = arith.constant 0.000000e+00 : f32
    %18 = vector.broadcast %cst : f32 to vector<32x128xf32>
    %19 = arith.cmpf oge, %17, %18 : vector<32x128xf32>
    %cst_9 = arith.constant 0.00999999977 : f32
    %20 = vector.broadcast %cst_9 : f32 to vector<32x128xf32>
    %21 = arith.mulf %20, %17 : vector<32x128xf32>
    %22 = arith.select %19, %17, %21 : vector<32x128xi1>, vector<32x128xf32>
    %c0_10 = arith.constant 0 : index
    %c0_11 = arith.constant 0 : index
    %23 = vector.load %arg3[%c0_10, %c0_11] : memref<32x32xf32, #tpu.memory_space<vmem>>, vector<32x32xf32>
    %cst_12 = arith.constant dense<0.000000e+00> : vector<32x128xf32>
    %24 = tpu.matmul %23, %22, %cst_12 {dimension_numbers = #tpu.dot_dimension_numbers<[1], [0], [0], [1], [0, 0, 1, 1], [], []>} : vector<32x32xf32>, vector<32x128xf32>, vector<32x128xf32> -> vector<32x128xf32>
    %25 = vector.broadcast %1 : vector<32x1xf32> to vector<32x128xf32>
    %26 = arith.addf %24, %25 : vector<32x128xf32>
    %cst_13 = arith.constant 0.000000e+00 : f32
    %27 = vector.broadcast %cst_13 : f32 to vector<32x128xf32>
    %28 = arith.cmpf oge, %26, %27 : vector<32x128xf32>
    %cst_14 = arith.constant 0.00999999977 : f32
    %29 = vector.broadcast %cst_14 : f32 to vector<32x128xf32>
    %30 = arith.mulf %29, %26 : vector<32x128xf32>
    %31 = arith.select %28, %26, %30 : vector<32x128xi1>, vector<32x128xf32>
    %c0_15 = arith.constant 0 : index
    %c0_16 = arith.constant 0 : index
    %32 = vector.load %arg4[%c0_15, %c0_16] : memref<32x32xf32, #tpu.memory_space<vmem>>, vector<32x32xf32>
    %cst_17 = arith.constant dense<0.000000e+00> : vector<32x128xf32>
    %33 = tpu.matmul %32, %31, %cst_17 {dimension_numbers = #tpu.dot_dimension_numbers<[1], [0], [0], [1], [0, 0, 1, 1], [], []>} : vector<32x32xf32>, vector<32x128xf32>, vector<32x128xf32> -> vector<32x128xf32>
    %34 = vector.broadcast %2 : vector<32x1xf32> to vector<32x128xf32>
    %35 = arith.addf %33, %34 : vector<32x128xf32>
    %cst_18 = arith.constant 0.000000e+00 : f32
    %36 = vector.broadcast %cst_18 : f32 to vector<32x128xf32>
    %37 = arith.cmpf oge, %35, %36 : vector<32x128xf32>
    %cst_19 = arith.constant 0.00999999977 : f32
    %38 = vector.broadcast %cst_19 : f32 to vector<32x128xf32>
    %39 = arith.mulf %38, %35 : vector<32x128xf32>
    %40 = arith.select %37, %35, %39 : vector<32x128xi1>, vector<32x128xf32>
    %c0_20 = arith.constant 0 : index
    %c0_21 = arith.constant 0 : index
    %41 = vector.load %arg5[%c0_20, %c0_21] : memref<2x32xf32, #tpu.memory_space<vmem>>, vector<2x32xf32>
    %cst_22 = arith.constant dense<0.000000e+00> : vector<2x128xf32>
    %42 = tpu.matmul %41, %40, %cst_22 {dimension_numbers = #tpu.dot_dimension_numbers<[1], [0], [0], [1], [0, 0, 1, 1], [], []>} : vector<2x32xf32>, vector<32x128xf32>, vector<2x128xf32> -> vector<2x128xf32>
    %43 = vector.broadcast %3 : vector<2x1xf32> to vector<2x128xf32>
    %44 = arith.addf %42, %43 : vector<2x128xf32>
    %45 = arith.negf %44 : vector<2x128xf32>
    %46 = math.exp %45 : vector<2x128xf32>
    %cst_23 = arith.constant 1.000000e+00 : f32
    %47 = vector.broadcast %cst_23 : f32 to vector<2x128xf32>
    %48 = arith.addf %47, %46 : vector<2x128xf32>
    %49 = arith.divf %47, %48 : vector<2x128xf32>
    %c0_24 = arith.constant 0 : index
    %c0_25 = arith.constant 0 : index
    %50 = vector.load %arg7[%c0_24, %c0_25] : memref<2x128xf32, #tpu.memory_space<vmem>>, vector<2x128xf32>
    tpu.vector_store %arg7[%c0_24, %c0_25], %49 {strides = array<i32>} : memref<2x128xf32, #tpu.memory_space<vmem>>, vector<2x128xf32>,
    return
  }
  func.func @transform_0(%arg0: i32) -> (i32, i32) {
    %c0_i32 = arith.constant 0 : i32
    %c0_i32_0 = arith.constant 0 : i32
    return %c0_i32, %arg0 : i32, i32
  }
  func.func @transform_1(%arg0: i32) -> (i32, i32) {
    %c0_i32 = arith.constant 0 : i32
    %c0_i32_0 = arith.constant 0 : i32
    %c0_i32_1 = arith.constant 0 : i32
    return %c0_i32, %c0_i32_0 : i32, i32
  }
  func.func @transform_2(%arg0: i32) -> (i32, i32) {
    %c0_i32 = arith.constant 0 : i32
    %c0_i32_0 = arith.constant 0 : i32
    %c0_i32_1 = arith.constant 0 : i32
    return %c0_i32, %c0_i32_0 : i32, i32
  }
  func.func @transform_3(%arg0: i32) -> (i32, i32) {
    %c0_i32 = arith.constant 0 : i32
    %c0_i32_0 = arith.constant 0 : i32
    %c0_i32_1 = arith.constant 0 : i32
    return %c0_i32, %c0_i32_0 : i32, i32
  }
  func.func @transform_4(%arg0: i32) -> (i32, i32) {
    %c0_i32 = arith.constant 0 : i32
    %c0_i32_0 = arith.constant 0 : i32
    %c0_i32_1 = arith.constant 0 : i32
    return %c0_i32, %c0_i32_0 : i32, i32
  }
  func.func @transform_5(%arg0: i32) -> (i32, i32) {
    %c0_i32 = arith.constant 0 : i32
    %c0_i32_0 = arith.constant 0 : i32
    %c0_i32_1 = arith.constant 0 : i32
    return %c0_i32, %c0_i32_0 : i32, i32
  }
  func.func @transform_6(%arg0: i32) -> (i32, i32) {
    %c0_i32 = arith.constant 0 : i32
    %c0_i32_0 = arith.constant 0 : i32
    return %c0_i32, %arg0 : i32, i32
  }
}

</mosaic_0001>

<llo_original>
// kernel: tpu_custom_call.1
$region0: #{tpu_custom_call.1}
  #allocation0 [shape = 'u32[]', space=smem, size = 0x4, offset = 0x4, fixed_abs, tag = 'smem constant byte address 0x4 - core index']
  #allocation1 [shape = 'u32[144,128]{1,0:T(1,128)}', space=vmem, size = 0x12000, scoped, tag = 'internal scratch']
  %s0 = inlined_call_operand.vmem [shape: f32[2,256], index: 0, kind: input, shape index: {}]
  %s1 = inlined_call_operand.vmem [shape: f32[32,2], index: 1, kind: input, shape index: {}]
  %s2 = inlined_call_operand.vmem [shape: f32[32,32], index: 2, kind: input, shape index: {}]
  %s3 = inlined_call_operand.vmem [shape: f32[32,32], index: 3, kind: input, shape index: {}]
  %s4 = inlined_call_operand.vmem [shape: f32[2,32], index: 4, kind: input, shape index: {}]
  %s5 = inlined_call_operand.vmem [shape: f32[104,1], index: 5, kind: input, shape index: {}]
  %s6 = inlined_call_operand.hbm [shape: f32[2,256], index: 6, kind: output, shape index: {}]
  %s7 = sld [smem:[#allocation0]]
  $region57: #{tpu_custom_call.1} parent=0
    _
  %s9 = ssub.s32 1, %s7
  %s10 = scalar_select 0, %s9, %s7
  $region1: #{tpu_custom_call.1} parent=0
    #allocation2 [shape = 'u8[2048]{0}', space=vmem, size = 0x800, scoped, tag = 'output window, operand 0']
    #allocation3 [shape = 's32[2]{0}', space=sflag, size = 0x8, scoped, tag = 'scoped memory for tpu_custom_call.1']
    %11 = vsyncpa [#allocation3], 0
    %s12 = scalar_lea.sflag [#allocation3], 1
    %13 = vsyncpa %s12, 0
    loop: start=0, step=1, limit=4
    $region2: #{tpu_custom_call.1} parent=1 // loop_pre_header
      _
    $region3: #{tpu_custom_call.1} parent=1 // loop_header
      %s15 = sphi 0, %s19
      %p16 = scmp.ge.s32.totalorder %s15, 4
      %s25 = sphi 0, %s27
      %s28 = sphi 0, %s25
      %s29 = sphi 0, %s28
      %s45 = sphi 0, %s29
      %s49 = sphi 0, %s49
      %s51 = sphi 0, %s49
      %s52 = sphi 0, %s51
      %s66 = sphi 0, %s52
      %s70 = sphi 0, %s70
      %s72 = sphi 0, %s70
      %s73 = sphi 0, %s72
      %s87 = sphi 0, %s73
      %s91 = sphi 0, %s91
      %s93 = sphi 0, %s91
      %s94 = sphi 0, %s93
      %s108 = sphi 0, %s94
      %s112 = sphi 0, %s112
      %s114 = sphi 0, %s112
      %s115 = sphi 0, %s114
      %s129 = sphi 0, %s115
      %s133 = sphi 0, %s133
      %s135 = sphi 0, %s133
      %s136 = sphi 0, %s135
      %s150 = sphi 0, %s136
      %s156 = sphi 0, %s158
      %s159 = sphi 0, %s156
      %s160 = sphi 0, %s159
      %s176 = sphi 0, %s160
    $region4: #{tpu_custom_call.1} parent=1 // loop_header_branch
      %18 = sbr.rel (%p16) target = $region8
    $region5: #{tpu_custom_call.1} parent=1 // loop_body
      %s20 = ssub.s32 %s15, 1
      %s21 = ssub.s32 %s15, 2
      %s22 = sadd.s32 %s15, 1
      %s23 = ssub.s32 %s15, %s22
      %p24 = scmp.eq.s32.totalorder %s23, 0
      %s26 = sadd.s32 %s25, 1
      %s27 = scalar_select %p24, %s25, %s26
      %p30 = pneg %p24
      %p31 = scmp.eq.s32.totalorder %s15, 1
      %p32 = por %p30, %p31
      %p33 = scmp.ne.s32.totalorder %s25, %s28
      %p34 = scmp.eq.s32.totalorder %s15, 0
      %p35 = por %p33, %p34
      %p36 = scmp.ne.s32.totalorder %s25, %s28
      %p37 = scmp.eq.s32.totalorder %s20, 1
      %p38 = por %p36, %p37
      %p39 = scmp.ne.s32.totalorder %s28, %s29
      %p40 = scmp.eq.s32.totalorder %s20, 0
      %p41 = por %p39, %p40
      %p42 = scmp.ne.s32.totalorder %s28, %s29
      %p43 = scmp.eq.s32.totalorder %s21, 1
      %p44 = por %p42, %p43
      %p46 = scmp.ne.s32.totalorder %s29, %s45
      %p47 = scmp.eq.s32.totalorder %s21, 0
      %p48 = por %p46, %p47
      %s50 = sadd.s32 %s49, 1
      %p53 = scmp.eq.s32.totalorder %s15, 1
      %p54 = scmp.ne.s32.totalorder %s49, %s51
      %p55 = scmp.eq.s32.totalorder %s15, 0
      %p56 = por %p54, %p55
      %p57 = scmp.ne.s32.totalorder %s49, %s51
      %p58 = scmp.eq.s32.totalorder %s20, 1
      %p59 = por %p57, %p58
      %p60 = scmp.ne.s32.totalorder %s51, %s52
      %p61 = scmp.eq.s32.totalorder %s20, 0
      %p62 = por %p60, %p61
      %p63 = scmp.ne.s32.totalorder %s51, %s52
      %p64 = scmp.eq.s32.totalorder %s21, 1
      %p65 = por %p63, %p64
      %p67 = scmp.ne.s32.totalorder %s52, %s66
      %p68 = scmp.eq.s32.totalorder %s21, 0
      %p69 = por %p67, %p68
      %s71 = sadd.s32 %s70, 1
      %p74 = scmp.eq.s32.totalorder %s15, 1
      %p75 = scmp.ne.s32.totalorder %s70, %s72
      %p76 = scmp.eq.s32.totalorder %s15, 0
      %p77 = por %p75, %p76
      %p78 = scmp.ne.s32.totalorder %s70, %s72
      %p79 = scmp.eq.s32.totalorder %s20, 1
      %p80 = por %p78, %p79
      %p81 = scmp.ne.s32.totalorder %s72, %s73
      %p82 = scmp.eq.s32.totalorder %s20, 0
      %p83 = por %p81, %p82
      %p84 = scmp.ne.s32.totalorder %s72, %s73
      %p85 = scmp.eq.s32.totalorder %s21, 1
      %p86 = por %p84, %p85
      %p88 = scmp.ne.s32.totalorder %s73, %s87
      %p89 = scmp.eq.s32.totalorder %s21, 0
      %p90 = por %p88, %p89
      %s92 = sadd.s32 %s91, 1
      %p95 = scmp.eq.s32.totalorder %s15, 1
      %p96 = scmp.ne.s32.totalorder %s91, %s93
      %p97 = scmp.eq.s32.totalorder %s15, 0
      %p98 = por %p96, %p97
      %p99 = scmp.ne.s32.totalorder %s91, %s93
      %p100 = scmp.eq.s32.totalorder %s20, 1
      %p101 = por %p99, %p100
      %p102 = scmp.ne.s32.totalorder %s93, %s94
      %p103 = scmp.eq.s32.totalorder %s20, 0
      %p104 = por %p102, %p103
      %p105 = scmp.ne.s32.totalorder %s93, %s94
      %p106 = scmp.eq.s32.totalorder %s21, 1
      %p107 = por %p105, %p106
      %p109 = scmp.ne.s32.totalorder %s94, %s108
      %p110 = scmp.eq.s32.totalorder %s21, 0
      %p111 = por %p109, %p110
      %s113 = sadd.s32 %s112, 1
      %p116 = scmp.eq.s32.totalorder %s15, 1
      %p117 = scmp.ne.s32.totalorder %s112, %s114
      %p118 = scmp.eq.s32.totalorder %s15, 0
      %p119 = por %p117, %p118
      %p120 = scmp.ne.s32.totalorder %s112, %s114
      %p121 = scmp.eq.s32.totalorder %s20, 1
      %p122 = por %p120, %p121
      %p123 = scmp.ne.s32.totalorder %s114, %s115
      %p124 = scmp.eq.s32.totalorder %s20, 0
      %p125 = por %p123, %p124
      %p126 = scmp.ne.s32.totalorder %s114, %s115
      %p127 = scmp.eq.s32.totalorder %s21, 1
      %p128 = por %p126, %p127
      %p130 = scmp.ne.s32.totalorder %s115, %s129
      %p131 = scmp.eq.s32.totalorder %s21, 0
      %p132 = por %p130, %p131
      %s134 = sadd.s32 %s133, 1
      %p137 = scmp.eq.s32.totalorder %s15, 1
      %p138 = scmp.ne.s32.totalorder %s133, %s135
      %p139 = scmp.eq.s32.totalorder %s15, 0
      %p140 = por %p138, %p139
      %p141 = scmp.ne.s32.totalorder %s133, %s135
      %p142 = scmp.eq.s32.totalorder %s20, 1
      %p143 = por %p141, %p142
      %p144 = scmp.ne.s32.totalorder %s135, %s136
      %p145 = scmp.eq.s32.totalorder %s20, 0
      %p146 = por %p144, %p145
      %p147 = scmp.ne.s32.totalorder %s135, %s136
      %p148 = scmp.eq.s32.totalorder %s21, 1
      %p149 = por %p147, %p148
      %p151 = scmp.ne.s32.totalorder %s136, %s150
      %p152 = scmp.eq.s32.totalorder %s21, 0
      %p153 = por %p151, %p152
      %s154 = ssub.s32 %s15, %s22
      %p155 = scmp.eq.s32.totalorder %s154, 0
      %s157 = sadd.s32 %s156, 1
      %s158 = scalar_select %p155, %s156, %s157
      %p161 = pneg %p155
      %p162 = scmp.eq.s32.totalorder %s15, 1
      %p163 = por %p161, %p162
      %p164 = scmp.ne.s32.totalorder %s156, %s159
      %p165 = scmp.eq.s32.totalorder %s15, 0
      %p166 = por %p164, %p165
      %p167 = scmp.ne.s32.totalorder %s156, %s159
      %p168 = scmp.eq.s32.totalorder %s20, 1
      %p169 = por %p167, %p168
      %p170 = scmp.ne.s32.totalorder %s159, %s160
      %p171 = scmp.eq.s32.totalorder %s20, 0
      %p172 = por %p170, %p171
      %p173 = scmp.ne.s32.totalorder %s159, %s160
      %p174 = scmp.eq.s32.totalorder %s21, 1
      %p175 = por %p173, %p174
      %p177 = scmp.ne.s32.totalorder %s160, %s176
      %p178 = scmp.eq.s32.totalorder %s21, 0
      %p179 = por %p177, %p178
      %p180 = scmp.le.s32.totalorder 1, %s15
      %p181 = scmp.lt.s32.totalorder %s15, 3
      %p182 = pnand %p180, %p181
      %p183 = pneg %p182
      // Predicated region
      $region9: #{tpu_custom_call.1} parent=5 // pred_check
        _
      $region10: #{tpu_custom_call.1} parent=5 // pred_check_branch
        %185 = sbr.rel (%p182) target = $region12
      $region11: #{tpu_custom_call.1} parent=5 // pred_region
        %s186 = ssub.s32 %s15, 1
        // Predicated region
        $region13: #{tpu_custom_call.1} parent=11 // pred_check
          %p187 = pneg %p62
        $region14: #{tpu_custom_call.1} parent=11 // pred_check_branch
          %189 = sbr.rel (%p187) target = $region16
        $region15: #{tpu_custom_call.1} parent=11 // pred_region
          _
        $region16: #{tpu_custom_call.1} parent=11 // pred_fallthru
          _
        // Predicated region
        $region17: #{tpu_custom_call.1} parent=11 // pred_check
          %p190 = pneg %p83
        $region18: #{tpu_custom_call.1} parent=11 // pred_check_branch
          %192 = sbr.rel (%p190) target = $region20
        $region19: #{tpu_custom_call.1} parent=11 // pred_region
          _
        $region20: #{tpu_custom_call.1} parent=11 // pred_fallthru
          _
        // Predicated region
        $region21: #{tpu_custom_call.1} parent=11 // pred_check
          %p193 = pneg %p104
        $region22: #{tpu_custom_call.1} parent=11 // pred_check_branch
          %195 = sbr.rel (%p193) target = $region24
        $region23: #{tpu_custom_call.1} parent=11 // pred_region
          _
        $region24: #{tpu_custom_call.1} parent=11 // pred_fallthru
          _
        // Predicated region
        $region25: #{tpu_custom_call.1} parent=11 // pred_check
          %p196 = pneg %p125
        $region26: #{tpu_custom_call.1} parent=11 // pred_check_branch
          %198 = sbr.rel (%p196) target = $region28
        $region27: #{tpu_custom_call.1} parent=11 // pred_region
          _
        $region28: #{tpu_custom_call.1} parent=11 // pred_fallthru
          _
        // Predicated region
        $region29: #{tpu_custom_call.1} parent=11 // pred_check
          %p199 = pneg %p146
        $region30: #{tpu_custom_call.1} parent=11 // pred_check_branch
          %201 = sbr.rel (%p199) target = $region32
        $region31: #{tpu_custom_call.1} parent=11 // pred_region
          _
        $region32: #{tpu_custom_call.1} parent=11 // pred_fallthru
          _
      $region12: #{tpu_custom_call.1} parent=5 // pred_fallthru
        _
      %p202 = scmp.lt.s32.totalorder %s15, 2
      // Predicated region
      $region33: #{tpu_custom_call.1} parent=5 // pred_check
        %p203 = pneg %p202
      $region34: #{tpu_custom_call.1} parent=5 // pred_check_branch
        %205 = sbr.rel (%p203) target = $region36
      $region35: #{tpu_custom_call.1} parent=5 // pred_region
        // Predicated region
        $region37: #{tpu_custom_call.1} parent=35 // pred_check
          %p206 = pneg %p35
        $region38: #{tpu_custom_call.1} parent=35 // pred_check_branch
          %208 = sbr.rel (%p206) target = $region40
        $region39: #{tpu_custom_call.1} parent=35 // pred_region
          %p209 = scmp.lt.s32.totalorder %s15, 1
          %s210 = scalar_select %p209, %s15, 1
          %s211 = smul.addr %s210, 2
          %s212 = scalar_lea.vmem %s0, %s211
        $region40: #{tpu_custom_call.1} parent=35 // pred_fallthru
          _
      $region36: #{tpu_custom_call.1} parent=5 // pred_fallthru
        _
      %p213 = scmp.le.s32.totalorder 1, %s15
      %p214 = scmp.lt.s32.totalorder %s15, 3
      %p215 = pnand %p213, %p214
      %p216 = pneg %p215
      // Predicated region
      $region41: #{tpu_custom_call.1} parent=5 // pred_check
        _
      $region42: #{tpu_custom_call.1} parent=5 // pred_check_branch
        %218 = sbr.rel (%p215) target = $region44
      $region43: #{tpu_custom_call.1} parent=5 // pred_region
        %s219 = ssub.s32 %s15, 1
        %p220 = scmp.lt.s32.totalorder %s20, 1
        %s221 = scalar_select %p220, %s20, 1
        %s222 = smul.addr %s221, 2
        %s223 = scalar_lea.vmem %s0, %s222
        %p224 = pneg %p41
        %p225 = pneg %p38
        %p226 = pneg %p62
        %p227 = pneg %p59
        %p228 = pneg %p83
        %p229 = pneg %p80
        %p230 = pneg %p104
        %p231 = pneg %p101
        %p232 = pneg %p125
        %p233 = pneg %p122
        %p234 = pneg %p146
        %p235 = pneg %p143
        %p236 = pneg %p172
        %p237 = pneg %p169
        %s238 = sand.u32 %s159, 1
        %s239 = scalar_lea.sflag [#allocation3], %s238
        %s240 = sand.u32 %s159, 1
        %s241 = smul.addr %s240, 2
        %s242 = scalar_lea.vmem [#allocation2], %s241
        %p243 = scmp.lt.s32.totalorder %s20, 1
        %s244 = scalar_select %p243, %s20, 1
        %s245 = smul.addr %s244, 2
        %s246 = scalar_lea.vmem %s0, %s245
        %v247 = vld [vmem:[%s5] sm:$0xff]
        %v248 = vld [vmem:[%s5 + $0x8] sm:$0xff]
        %v249 = vld [vmem:[%s5 + $0x10] sm:$0xff]
        %v250 = vld [vmem:[%s5 + $0x18] sm:$0xff]
        %v251 = vld [vmem:[%s5 + $0x20] sm:$0xff]
        %v252 = vld [vmem:[%s5 + $0x28] sm:$0xff]
        %v253 = vld [vmem:[%s5 + $0x30] sm:$0xff]
        %v254 = vld [vmem:[%s5 + $0x38] sm:$0xff]
        %v255 = vld [vmem:[%s5 + $0x40] sm:$0xff]
        %v256 = vld [vmem:[%s5 + $0x48] sm:$0xff]
        %v257 = vld [vmem:[%s5 + $0x50] sm:$0xff]
        %v258 = vld [vmem:[%s5 + $0x58] sm:$0xff]
        %v259 = vld [vmem:[%s5 + $0x60] sm:$0x3]
        %v260 = vld [vmem:[%s246] sm:$0x3]
        %v261 = vld [vmem:[%s1] sm:$0xff]
        %v262 = vld [vmem:[%s1 + $0x8] sm:$0xff]
        %v263 = vld [vmem:[%s1 + $0x10] sm:$0xff]
        %v264 = vld [vmem:[%s1 + $0x18] sm:$0xff]
        %266 = vset.pattern.permute.xlu0 0
        %267 = vperm.xlu0 %266, %v261
        %v268 = vpop.permute.xlu0 %267
        %271 = vset.pattern.permute.xlu0 0
        %272 = vperm.xlu0 %271, %v262
        %v273 = vpop.permute.xlu0 %272
        %276 = vset.pattern.permute.xlu0 0
        %277 = vperm.xlu0 %276, %v263
        %v278 = vpop.permute.xlu0 %277
        %281 = vset.pattern.permute.xlu0 0
        %282 = vperm.xlu0 %281, %v264
        %v283 = vpop.permute.xlu0 %282
        %v285 = vlaneseq
        %v286 = vshrl.u32 %v285, 7
        %v287 = vsub.s32 0, %v286
        %v288 = vrot.slane %v260, %v287
        %v289 = vmul.f32 %v268, %v288
        %v290 = vmul.f32 %v273, %v288
        %v291 = vmul.f32 %v278, %v288
        %v292 = vmul.f32 %v283, %v288
        %294 = vset.pattern.permute.xlu0 0
        %295 = vperm.xlu0 %294, %v247
        %v296 = vpop.permute.xlu0 %295
        %299 = vset.pattern.permute.xlu0 0
        %300 = vperm.xlu0 %299, %v248
        %v301 = vpop.permute.xlu0 %300
        %304 = vset.pattern.permute.xlu0 0
        %305 = vperm.xlu0 %304, %v249
        %v306 = vpop.permute.xlu0 %305
        %309 = vset.pattern.permute.xlu0 0
        %310 = vperm.xlu0 %309, %v250
        %v311 = vpop.permute.xlu0 %310
        %v313 = vadd.f32 %v296, %v289
        %v314 = vadd.f32 %v301, %v290
        %v315 = vadd.f32 %v306, %v291
        %v316 = vadd.f32 %v311, %v292
        %317 = vset.pattern.permute.xlu0 1
        %318 = vperm.xlu0 %317, %v261
        %v319 = vpop.permute.xlu0 %318
        %321 = vset.pattern.permute.xlu0 1
        %322 = vperm.xlu0 %321, %v262
        %v323 = vpop.permute.xlu0 %322
        %325 = vset.pattern.permute.xlu0 1
        %326 = vperm.xlu0 %325, %v263
        %v327 = vpop.permute.xlu0 %326
        %329 = vset.pattern.permute.xlu0 1
        %330 = vperm.xlu0 %329, %v264
        %v331 = vpop.permute.xlu0 %330
        %v333 = vlaneseq
        %v334 = vshrl.u32 %v333, 7
        %v335 = vsub.s32 1, %v334
        %v336 = vrot.slane %v260, %v335
        %v337 = vmul.f32 %v319, %v336
        %v338 = vmul.f32 %v323, %v336
        %v339 = vmul.f32 %v327, %v336
        %v340 = vmul.f32 %v331, %v336
        %v341 = vadd.f32 %v313, %v337
        %v342 = vadd.f32 %v314, %v338
        %v343 = vadd.f32 %v315, %v339
        %v344 = vadd.f32 %v316, %v340
        %vm345 = vcmp.ge.f32.partialorder %v341, 0.0
        %vm346 = vcmp.ge.f32.partialorder %v342, 0.0
        %vm347 = vcmp.ge.f32.partialorder %v343, 0.0
        %vm348 = vcmp.ge.f32.partialorder %v344, 0.0
        %v349 = vmul.f32 %v341, 0.01
        %v350 = vmul.f32 %v342, 0.01
        %v351 = vmul.f32 %v343, 0.01
        %v352 = vmul.f32 %v344, 0.01
        %v353 = vsel %vm345, %v341, %v349
        %v354 = vsel %vm346, %v342, %v350
        %v355 = vsel %vm347, %v343, %v351
        %v356 = vsel %vm348, %v344, %v352
        %v357 = vld [vmem:[%s2] sm:$0xff]
        %v358 = vld [vmem:[%s2 + $0x8] sm:$0xff]
        %v359 = vld [vmem:[%s2 + $0x10] sm:$0xff]
        %v360 = vld [vmem:[%s2 + $0x18] sm:$0xff]
        %362 = vset.pattern.permute.xlu0 0
        %363 = vperm.xlu0 %362, %v251
        %v364 = vpop.permute.xlu0 %363
        %367 = vset.pattern.permute.xlu0 0
        %368 = vperm.xlu0 %367, %v252
        %v369 = vpop.permute.xlu0 %368
        %372 = vset.pattern.permute.xlu0 0
        %373 = vperm.xlu0 %372, %v253
        %v374 = vpop.permute.xlu0 %373
        %377 = vset.pattern.permute.xlu0 0
        %378 = vperm.xlu0 %377, %v254
        %v379 = vpop.permute.xlu0 %378
        %vm381 = vcmask 261120
        %v383 = vsel %vm381, %v357, 0
        %v386 = vsel %vm381, %v358, 0
        %v389 = vsel %vm381, %v359, 0
        %v392 = vsel %vm381, %v360, 0
        %394 = vmatprep.subr.mxu0 0.0
        %395 = vmatpush1.msra.mxu0 %v353
        %396 = vmatprep.subr.mxu0 0.0
        %397 = vmatpush1.msra.mxu0 %v354
        %398 = vmatprep.subr.mxu0 0.0
        %399 = vmatpush1.msra.mxu0 %v355
        %400 = vmatprep.subr.mxu0 0.0
        %401 = vmatpush1.msra.mxu0 %v356
        %402 = vmatprep.subr.mxu0 0.0
        %403 = vmatpush1.msra.mxu0 0.0
        %404 = vmatprep.subr.mxu0 0.0
        %405 = vmatpush1.msra.mxu0 0.0
        %406 = vmatprep.subr.mxu0 0.0
        %407 = vmatpush1.msra.mxu0 0.0
        %408 = vmatprep.subr.mxu0 0.0
        %409 = vmatpush1.msra.mxu0 0.0
        %410 = vmatprep.subr.mxu0 0.0
        %411 = vmatpush1.msra.mxu0 0.0
        %412 = vmatprep.subr.mxu0 0.0
        %413 = vmatpush1.msra.mxu0 0.0
        %414 = vmatprep.subr.mxu0 0.0
        %415 = vmatpush1.msra.mxu0 0.0
        %416 = vmatprep.subr.mxu0 0.0
        %417 = vmatpush1.msra.mxu0 0.0
        %418 = vmatprep.subr.mxu0 0.0
        %419 = vmatpush1.msra.mxu0 0.0
        %420 = vmatprep.subr.mxu0 0.0
        %421 = vmatpush1.msra.mxu0 0.0
        %422 = vmatprep.subr.mxu0 0.0
        %423 = vmatpush1.msra.mxu0 0.0
        %424 = vmatprep.subr.mxu0 0.0
        %425 = vmatpush1.msra.mxu0 0.0
        %426 = vmatprep.subr.mxu0 0.0
        %427 = vmatpush1.msra.mxu0 0.0
        %428 = vmatprep.subr.mxu0 0.0
        %429 = vmatpush1.msra.mxu0 0.0
        %430 = vmatprep.subr.mxu0 0.0
        %431 = vmatpush1.msra.mxu0 0.0
        %432 = vmatprep.subr.mxu0 0.0
        %433 = vmatpush1.msra.mxu0 0.0
        %434 = vmatprep.subr.mxu0 0.0
        %435 = vmatpush1.msra.mxu0 0.0
        %436 = vmatprep.subr.mxu0 0.0
        %437 = vmatpush1.msra.mxu0 0.0
        %438 = vmatprep.subr.mxu0 0.0
        %439 = vmatpush1.msra.mxu0 0.0
        %440 = vmatprep.subr.mxu0 0.0
        %441 = vmatpush1.msra.mxu0 0.0
        %442 = vmatprep.subr.mxu0 0.0
        %443 = vmatpush1.msra.mxu0 0.0
        %444 = vmatprep.subr.mxu0 0.0
        %445 = vmatpush1.msra.mxu0 0.0
        %446 = vmatprep.subr.mxu0 0.0
        %447 = vmatpush1.msra.mxu0 0.0
        %448 = vmatprep.subr.mxu0 0.0
        %449 = vmatpush1.msra.mxu0 0.0
        %450 = vmatprep.subr.mxu0 0.0
        %451 = vmatpush1.msra.mxu0 0.0
        %452 = vmatprep.subr.mxu0 0.0
        %453 = vmatpush1.msra.mxu0 0.0
        %454 = vmatprep.subr.mxu0 0.0
        %455 = vmatpush1.msra.mxu0 0.0
        %456 = vmatprep.subr.mxu0 0.0
        %457 = vmatpush1.msra.mxu0 0.0
        %458 = vmatprep.mubr.f32.mxu0 0.0
        %459 = vmatmul.mubr.f32.gmra.mrb[0].mxu0 %v383
        %v460 = vpop.f32.mrb[0].mxu0
        %v461 = vadd.f32 %v364, %v460
        %v462 = vpop.f32.mrb[0].mxu0
        %463 = vmatprep.mubr.f32.mxu0 0.0
        %464 = vmatmul.mubr.f32.gmra.mrb[0].mxu0 %v386
        %v465 = vpop.f32.mrb[0].mxu0
        %v466 = vadd.f32 %v369, %v465
        %v467 = vpop.f32.mrb[0].mxu0
        %468 = vmatprep.mubr.f32.mxu0 0.0
        %469 = vmatmul.mubr.f32.gmra.mrb[0].mxu0 %v389
        %v470 = vpop.f32.mrb[0].mxu0
        %v471 = vadd.f32 %v374, %v470
        %v472 = vpop.f32.mrb[0].mxu0
        %473 = vmatprep.mubr.f32.mxu0 0.0
        %474 = vmatmul.mubr.f32.gmra.mrb[0].mxu0 %v392
        %v475 = vpop.f32.mrb[0].mxu0
        %v476 = vadd.f32 %v379, %v475
        %v477 = vpop.f32.mrb[0].mxu0
        %478 = vdwg.mxu0
        %vm479 = vcmp.ge.f32.partialorder %v461, 0.0
        %vm480 = vcmp.ge.f32.partialorder %v466, 0.0
        %vm481 = vcmp.ge.f32.partialorder %v471, 0.0
        %vm482 = vcmp.ge.f32.partialorder %v476, 0.0
        %v483 = vmul.f32 %v461, 0.01
        %v484 = vmul.f32 %v466, 0.01
        %v485 = vmul.f32 %v471, 0.01
        %v486 = vmul.f32 %v476, 0.01
        %v487 = vsel %vm479, %v461, %v483
        %v488 = vsel %vm480, %v466, %v484
        %v489 = vsel %vm481, %v471, %v485
        %v490 = vsel %vm482, %v476, %v486
        %v491 = vld [vmem:[%s3] sm:$0xff]
        %v492 = vld [vmem:[%s3 + $0x8] sm:$0xff]
        %v493 = vld [vmem:[%s3 + $0x10] sm:$0xff]
        %v494 = vld [vmem:[%s3 + $0x18] sm:$0xff]
        %496 = vset.pattern.permute.xlu0 0
        %497 = vperm.xlu0 %496, %v255
        %v498 = vpop.permute.xlu0 %497
        %501 = vset.pattern.permute.xlu0 0
        %502 = vperm.xlu0 %501, %v256
        %v503 = vpop.permute.xlu0 %502
        %506 = vset.pattern.permute.xlu0 0
        %507 = vperm.xlu0 %506, %v257
        %v508 = vpop.permute.xlu0 %507
        %511 = vset.pattern.permute.xlu0 0
        %512 = vperm.xlu0 %511, %v258
        %v513 = vpop.permute.xlu0 %512
        %v516 = vsel %vm381, %v491, 0
        %v519 = vsel %vm381, %v492, 0
        %v522 = vsel %vm381, %v493, 0
        %v525 = vsel %vm381, %v494, 0
        %527 = vmatprep.subr.mxu0 0.0
        %528 = vmatpush1.msra.mxu0 %v487
        %529 = vmatprep.subr.mxu0 0.0
        %530 = vmatpush1.msra.mxu0 %v488
        %531 = vmatprep.subr.mxu0 0.0
        %532 = vmatpush1.msra.mxu0 %v489
        %533 = vmatprep.subr.mxu0 0.0
        %534 = vmatpush1.msra.mxu0 %v490
        %535 = vmatprep.subr.mxu0 0.0
        %536 = vmatpush1.msra.mxu0 0.0
        %537 = vmatprep.subr.mxu0 0.0
        %538 = vmatpush1.msra.mxu0 0.0
        %539 = vmatprep.subr.mxu0 0.0
        %540 = vmatpush1.msra.mxu0 0.0
        %541 = vmatprep.subr.mxu0 0.0
        %542 = vmatpush1.msra.mxu0 0.0
        %543 = vmatprep.subr.mxu0 0.0
        %544 = vmatpush1.msra.mxu0 0.0
        %545 = vmatprep.subr.mxu0 0.0
        %546 = vmatpush1.msra.mxu0 0.0
        %547 = vmatprep.subr.mxu0 0.0
        %548 = vmatpush1.msra.mxu0 0.0
        %549 = vmatprep.subr.mxu0 0.0
        %550 = vmatpush1.msra.mxu0 0.0
        %551 = vmatprep.subr.mxu0 0.0
        %552 = vmatpush1.msra.mxu0 0.0
        %553 = vmatprep.subr.mxu0 0.0
        %554 = vmatpush1.msra.mxu0 0.0
        %555 = vmatprep.subr.mxu0 0.0
        %556 = vmatpush1.msra.mxu0 0.0
        %557 = vmatprep.subr.mxu0 0.0
        %558 = vmatpush1.msra.mxu0 0.0
        %559 = vmatprep.subr.mxu0 0.0
        %560 = vmatpush1.msra.mxu0 0.0
        %561 = vmatprep.subr.mxu0 0.0
        %562 = vmatpush1.msra.mxu0 0.0
        %563 = vmatprep.subr.mxu0 0.0
        %564 = vmatpush1.msra.mxu0 0.0
        %565 = vmatprep.subr.mxu0 0.0
        %566 = vmatpush1.msra.mxu0 0.0
        %567 = vmatprep.subr.mxu0 0.0
        %568 = vmatpush1.msra.mxu0 0.0
        %569 = vmatprep.subr.mxu0 0.0
        %570 = vmatpush1.msra.mxu0 0.0
        %571 = vmatprep.subr.mxu0 0.0
        %572 = vmatpush1.msra.mxu0 0.0
        %573 = vmatprep.subr.mxu0 0.0
        %574 = vmatpush1.msra.mxu0 0.0
        %575 = vmatprep.subr.mxu0 0.0
        %576 = vmatpush1.msra.mxu0 0.0
        %577 = vmatprep.subr.mxu0 0.0
        %578 = vmatpush1.msra.mxu0 0.0
        %579 = vmatprep.subr.mxu0 0.0
        %580 = vmatpush1.msra.mxu0 0.0
        %581 = vmatprep.subr.mxu0 0.0
        %582 = vmatpush1.msra.mxu0 0.0
        %583 = vmatprep.subr.mxu0 0.0
        %584 = vmatpush1.msra.mxu0 0.0
        %585 = vmatprep.subr.mxu0 0.0
        %586 = vmatpush1.msra.mxu0 0.0
        %587 = vmatprep.subr.mxu0 0.0
        %588 = vmatpush1.msra.mxu0 0.0
        %589 = vmatprep.subr.mxu0 0.0
        %590 = vmatpush1.msra.mxu0 0.0
        %591 = vmatprep.mubr.f32.mxu0 0.0
        %592 = vmatmul.mubr.f32.gmra.mrb[0].mxu0 %v516
        %v593 = vpop.f32.mrb[0].mxu0
        %v594 = vadd.f32 %v498, %v593
        %v595 = vpop.f32.mrb[0].mxu0
        %596 = vmatprep.mubr.f32.mxu0 0.0
        %597 = vmatmul.mubr.f32.gmra.mrb[0].mxu0 %v519
        %v598 = vpop.f32.mrb[0].mxu0
        %v599 = vadd.f32 %v503, %v598
        %v600 = vpop.f32.mrb[0].mxu0
        %601 = vmatprep.mubr.f32.mxu0 0.0
        %602 = vmatmul.mubr.f32.gmra.mrb[0].mxu0 %v522
        %v603 = vpop.f32.mrb[0].mxu0
        %v604 = vadd.f32 %v508, %v603
        %v605 = vpop.f32.mrb[0].mxu0
        %606 = vmatprep.mubr.f32.mxu0 0.0
        %607 = vmatmul.mubr.f32.gmra.mrb[0].mxu0 %v525
        %v608 = vpop.f32.mrb[0].mxu0
        %v609 = vadd.f32 %v513, %v608
        %v610 = vpop.f32.mrb[0].mxu0
        %611 = vdwg.mxu0
        %vm612 = vcmp.ge.f32.partialorder %v594, 0.0
        %vm613 = vcmp.ge.f32.partialorder %v599, 0.0
        %vm614 = vcmp.ge.f32.partialorder %v604, 0.0
        %vm615 = vcmp.ge.f32.partialorder %v609, 0.0
        %v616 = vmul.f32 %v594, 0.01
        %v617 = vmul.f32 %v599, 0.01
        %v618 = vmul.f32 %v604, 0.01
        %v619 = vmul.f32 %v609, 0.01
        %v620 = vsel %vm612, %v594, %v616
        %v621 = vsel %vm613, %v599, %v617
        %v622 = vsel %vm614, %v604, %v618
        %v623 = vsel %vm615, %v609, %v619
        %v624 = vld [vmem:[%s4] sm:$0x3]
        %626 = vset.pattern.permute.xlu0 0
        %627 = vperm.xlu0 %626, %v259
        %v628 = vpop.permute.xlu0 %627
        %v631 = vsel %vm381, %v624, 0
        %633 = vmatprep.subr.mxu0 0.0
        %634 = vmatpush1.msra.mxu0 %v620
        %635 = vmatprep.subr.mxu0 0.0
        %636 = vmatpush1.msra.mxu0 %v621
        %637 = vmatprep.subr.mxu0 0.0
        %638 = vmatpush1.msra.mxu0 %v622
        %639 = vmatprep.subr.mxu0 0.0
        %640 = vmatpush1.msra.mxu0 %v623
        %641 = vmatprep.subr.mxu0 0.0
        %642 = vmatpush1.msra.mxu0 0.0
        %643 = vmatprep.subr.mxu0 0.0
        %644 = vmatpush1.msra.mxu0 0.0
        %645 = vmatprep.subr.mxu0 0.0
        %646 = vmatpush1.msra.mxu0 0.0
        %647 = vmatprep.subr.mxu0 0.0
        %648 = vmatpush1.msra.mxu0 0.0
        %649 = vmatprep.subr.mxu0 0.0
        %650 = vmatpush1.msra.mxu0 0.0
        %651 = vmatprep.subr.mxu0 0.0
        %652 = vmatpush1.msra.mxu0 0.0
        %653 = vmatprep.subr.mxu0 0.0
        %654 = vmatpush1.msra.mxu0 0.0
        %655 = vmatprep.subr.mxu0 0.0
        %656 = vmatpush1.msra.mxu0 0.0
        %657 = vmatprep.subr.mxu0 0.0
        %658 = vmatpush1.msra.mxu0 0.0
        %659 = vmatprep.subr.mxu0 0.0
        %660 = vmatpush1.msra.mxu0 0.0
        %661 = vmatprep.subr.mxu0 0.0
        %662 = vmatpush1.msra.mxu0 0.0
        %663 = vmatprep.subr.mxu0 0.0
        %664 = vmatpush1.msra.mxu0 0.0
        %665 = vmatprep.subr.mxu0 0.0
        %666 = vmatpush1.msra.mxu0 0.0
        %667 = vmatprep.subr.mxu0 0.0
        %668 = vmatpush1.msra.mxu0 0.0
        %669 = vmatprep.subr.mxu0 0.0
        %670 = vmatpush1.msra.mxu0 0.0
        %671 = vmatprep.subr.mxu0 0.0
        %672 = vmatpush1.msra.mxu0 0.0
        %673 = vmatprep.subr.mxu0 0.0
        %674 = vmatpush1.msra.mxu0 0.0
        %675 = vmatprep.subr.mxu0 0.0
        %676 = vmatpush1.msra.mxu0 0.0
        %677 = vmatprep.subr.mxu0 0.0
        %678 = vmatpush1.msra.mxu0 0.0
        %679 = vmatprep.subr.mxu0 0.0
        %680 = vmatpush1.msra.mxu0 0.0
        %681 = vmatprep.subr.mxu0 0.0
        %682 = vmatpush1.msra.mxu0 0.0
        %683 = vmatprep.subr.mxu0 0.0
        %684 = vmatpush1.msra.mxu0 0.0
        %685 = vmatprep.subr.mxu0 0.0
        %686 = vmatpush1.msra.mxu0 0.0
        %687 = vmatprep.subr.mxu0 0.0
        %688 = vmatpush1.msra.mxu0 0.0
        %689 = vmatprep.subr.mxu0 0.0
        %690 = vmatpush1.msra.mxu0 0.0
        %691 = vmatprep.subr.mxu0 0.0
        %692 = vmatpush1.msra.mxu0 0.0
        %693 = vmatprep.subr.mxu0 0.0
        %694 = vmatpush1.msra.mxu0 0.0
        %695 = vmatprep.subr.mxu0 0.0
        %696 = vmatpush1.msra.mxu0 0.0
        %697 = vmatprep.mubr.f32.mxu0 0.0
        %698 = vmatmul.mubr.f32.gmra.mrb[0].mxu0 %v631
        %v699 = vpop.f32.mrb[0].mxu0
        %v700 = vadd.f32 %v628, %v699
        %v701 = vpop.f32.mrb[0].mxu0
        %702 = vdwg.mxu0
        %v703 = vxor.u32 %v700, 2147483648
        %v704 = vmul.f32 %v703, 1.442695
        %v705 = vpow.pop %v704
        %v706 = vadd.f32 %v705, 1.0
        %v707 = vrcp.pop %v706
        %v708 = vmul.f32 1.0, %v707
        %709 = vst [vmem:[%s242] sm:$0x3] %v708
        %s710 = sand.u32 %s159, 1
        %s711 = scalar_lea.sflag [#allocation3], %s710
        %s712 = sand.u32 %s159, 1
        %s713 = smul.addr %s712, 2
        %s714 = scalar_lea.vmem [#allocation2], %s713
        // Predicated region
        $region45: #{tpu_custom_call.1} parent=43 // pred_check
          %p715 = pneg %p169
        $region46: #{tpu_custom_call.1} parent=43 // pred_check_branch
          %717 = sbr.rel (%p715) target = $region48
        $region47: #{tpu_custom_call.1} parent=43 // pred_region
          %s719 = ssub.s32 32, 32
          %720 = vsyncadd %s711, %s719
          %s721 = smul.addr %s20, 32
          %s722 = scalar_lea.hbm %s6, %s721
          %s724 = sshll.u32 %s714, 4
          %s725 = int_to_ptr.vmem [resolvable:$true] %s724
          %727 = dma.vmem_to_hbm [thread:$0]  %s725, 32, %s722, %s711
        $region48: #{tpu_custom_call.1} parent=43 // pred_fallthru
          _
      $region44: #{tpu_custom_call.1} parent=5 // pred_fallthru
        _
      %p728 = scmp.le.s32.totalorder 2, %s15
      // Predicated region
      $region49: #{tpu_custom_call.1} parent=5 // pred_check
        %p729 = pneg %p728
      $region50: #{tpu_custom_call.1} parent=5 // pred_check_branch
        %731 = sbr.rel (%p729) target = $region52
      $region51: #{tpu_custom_call.1} parent=5 // pred_region
        %s732 = ssub.s32 %s15, 2
        // Predicated region
        $region53: #{tpu_custom_call.1} parent=51 // pred_check
          %p733 = pneg %p175
        $region54: #{tpu_custom_call.1} parent=51 // pred_check_branch
          %735 = sbr.rel (%p733) target = $region56
        $region55: #{tpu_custom_call.1} parent=51 // pred_region
          %s736 = sand.u32 %s160, 1
          %s737 = scalar_lea.sflag [#allocation3], %s736
          %s738 = sand.u32 %s160, 1
          %s739 = smul.addr %s738, 2
          %s740 = scalar_lea.vmem [#allocation2], %s739
          %741 = dma.done %s737, 32
        $region56: #{tpu_custom_call.1} parent=51 // pred_fallthru
          _
      $region52: #{tpu_custom_call.1} parent=5 // pred_fallthru
        _
    $region6: #{tpu_custom_call.1} parent=1 // loop_footer
      %s19 = sadd.s32 1, %s15
    $region7: #{tpu_custom_call.1} parent=1 // loop_footer_branch
      %14 = sbr.rel target = $region3
    $region8: #{tpu_custom_call.1} parent=1 // loop_exit
      _
    %742 = vsyncpa [#allocation3], 1
    %s743 = scalar_lea.sflag [#allocation3], 1
    %744 = vsyncpa %s743, 1

</llo_original>
